<compile_context>
chip_gen: v7x
topology: tpu7x:2x2x1
jax: 0.10.0
libtpu: 0.0.40
codegen_flags: <defaults>
</compile_context>

<pallas_src>
import functools

import jax
import jax.numpy as jnp
from jax.experimental import pallas as pl
from jax.experimental.pallas import tpu as pltpu


def _round_up(n, k):
    return ((n + k - 1) // k) * k


def _scaled_logits(x_ref, w_ref, sx_ref, rw_ref):
    """One (TB, TC) tile of scaled cosine logits (f32)."""
    # (TB, D) . (TC, D)^T on the MXU, f32 accumulation, no explicit transpose.
    raw = jax.lax.dot_general(
        x_ref[...], w_ref[...], (((1,), (1,)), ((), ())),
        preferred_element_type=jnp.float32,
    )                                          # (TB, TC) f32
    # Precomputed inverse norms applied as cheap broadcast post-scales.
    return raw * sx_ref[...] * rw_ref[...]     # (TB,1) and (1,TC) broadcasts


def _cosface_margin_kernel(x_ref, w_ref, sx_ref, rw_ref, lbl_ref, o_ref, *,
                           sm, block_c, class_axis):
    v = _scaled_logits(x_ref, w_ref, sx_ref, rw_ref)        # already * s
    # Loop-invariant local iota vs (label - class-tile origin): avoids a full
    # (TB, TC) integer add every grid step.
    col = jax.lax.broadcasted_iota(jnp.int32, v.shape, 1)
    tgt = lbl_ref[...] - pl.program_id(class_axis) * block_c  # (TB, 1)
    o_ref[...] = jnp.where(col == tgt, v - jnp.float32(sm), v).astype(o_ref.dtype)


def _cosface_plain_kernel(x_ref, w_ref, sx_ref, rw_ref, o_ref):
    o_ref[...] = _scaled_logits(x_ref, w_ref, sx_ref, rw_ref).astype(o_ref.dtype)


def cosface_forward(x, W, label=None, *, s=30.0, m=0.35,
                    block_b=None, block_c=1024,
                    mxu_dtype=None, out_dtype=jnp.float32):
    """CosFace forward. x: (B, D), W: (C, D), label: (B,) int or None.

    mxu_dtype=jnp.bfloat16 casts the matmul operands once in the wrapper (fast
    MXU path on all TPU generations, halves the W HBM stream); norms are always
    computed in f32 from the original inputs.
    """
    B, D = x.shape
    C, D2 = W.shape
    assert D == D2, "in_features mismatch"
    apply_margin = label is not None

    # ---- Hoisted normalization: tiny per-row scales, computed once by XLA ----
    eps = jnp.float32(1e-12)
    inv_x = 1.0 / jnp.maximum(
        jnp.linalg.norm(x.astype(jnp.float32), axis=1, keepdims=True), eps)   # (B,1)
    inv_w = 1.0 / jnp.maximum(
        jnp.linalg.norm(W.astype(jnp.float32), axis=1, keepdims=True), eps)   # (C,1)
    # Fold the CosFace scale s into the x-side scale on the margin path.
    sx = (inv_x * jnp.float32(s)) if apply_margin else inv_x                  # (B,1) f32
    rw = inv_w.reshape(1, C)                                                  # (1,C) f32

    if mxu_dtype is not None:
        x = x.astype(mxu_dtype)
        W = W.astype(mxu_dtype)
    in_bytes = jnp.dtype(x.dtype).itemsize
    out_bytes = jnp.dtype(out_dtype).itemsize

    # ---- Tile sizes (sublane/lane aligned). No HBM padding of x / W / out ----
    if block_b is None:
        tb_full = _round_up(B, 8)
        # Full-batch x tile when it fits a modest VMEM budget -> W streamed once.
        TB = tb_full if tb_full * D * in_bytes <= (16 << 20) else 512
    else:
        TB = int(block_b)
    TB = min(_round_up(TB, 8), _round_up(B, 8))
    TB = max(8, (TB // 8) * 8)

    TC = min(int(block_c), _round_up(C, 128))
    TC = max(128, (TC // 128) * 128)

    n_b = pl.cdiv(B, TB)
    n_c = pl.cdiv(C, TC)

    # Grid order: keep the operand with the larger streamed traffic resident.
    #   batch-outer:  W streamed n_b times, x once.
    #   class-outer:  x streamed n_c times, W once (better when TC >= TB).
    class_outer = (n_b > 1) and (n_c * B <= n_b * C)
    if class_outer:
        grid = (n_c, n_b)
        x_spec = pl.BlockSpec((TB, D), lambda cj, bi: (bi, 0))
        w_spec = pl.BlockSpec((TC, D), lambda cj, bi: (cj, 0))
        sx_spec = pl.BlockSpec((TB, 1), lambda cj, bi: (bi, 0))
        rw_spec = pl.BlockSpec((1, TC), lambda cj, bi: (0, cj))
        lbl_spec = pl.BlockSpec((TB, 1), lambda cj, bi: (bi, 0))
        out_spec = pl.BlockSpec((TB, TC), lambda cj, bi: (bi, cj))
        class_axis = 0
    else:
        grid = (n_b, n_c)
        x_spec = pl.BlockSpec((TB, D), lambda bi, cj: (bi, 0))
        w_spec = pl.BlockSpec((TC, D), lambda bi, cj: (cj, 0))
        sx_spec = pl.BlockSpec((TB, 1), lambda bi, cj: (bi, 0))
        rw_spec = pl.BlockSpec((1, TC), lambda bi, cj: (0, cj))
        lbl_spec = pl.BlockSpec((TB, 1), lambda bi, cj: (bi, 0))
        out_spec = pl.BlockSpec((TB, TC), lambda bi, cj: (bi, cj))
        class_axis = 1

    # Double-buffered x/W tiles + output tile + tiny scale/label blocks.
    vmem_need = (2 * (TB * D + TC * D) * in_bytes
                 + 2 * TB * TC * out_bytes
                 + 4 * TB * 4 + 2 * TC * 4)
    cp_kwargs = {}
    if vmem_need > (12 << 20):
        # Raise the scoped VMEM limit only when needed; stay under v7x's 64 MiB.
        cp_kwargs["vmem_limit_bytes"] = int(min(64 << 20, 2 * vmem_need))
    cparams = pltpu.CompilerParams(
        dimension_semantics=("parallel", "parallel"), **cp_kwargs)

    cost = pl.CostEstimate(
        flops=2 * B * C * D,
        transcendentals=0,
        bytes_accessed=int(x.size * in_bytes + W.size * in_bytes
                           + B * C * out_bytes + (B + C + B) * 4))

    out_shape = jax.ShapeDtypeStruct((B, C), out_dtype)

    if apply_margin:
        lbl2d = label.astype(jnp.int32).reshape(B, 1)
        kernel = functools.partial(
            _cosface_margin_kernel,
            sm=float(s) * float(m), block_c=TC, class_axis=class_axis)
        return pl.pallas_call(
            kernel,
            out_shape=out_shape,
            grid=grid,
            in_specs=[x_spec, w_spec, sx_spec, rw_spec, lbl_spec],
            out_specs=out_spec,
            compiler_params=cparams,
            cost_estimate=cost,
        )(x, W, sx, rw, lbl2d)

    return pl.pallas_call(
        _cosface_plain_kernel,
        out_shape=out_shape,
        grid=grid,
        in_specs=[x_spec, w_spec, sx_spec, rw_spec],
        out_specs=out_spec,
        compiler_params=cparams,
        cost_estimate=cost,
    )(x, W, sx, rw)


def xavier_uniform(key, out_features, in_features):
    # nn.init.xavier_uniform_: U(-a, a) with a = sqrt(6 / (fan_in + fan_out))
    bound = (6.0 / (in_features + out_features)) ** 0.5
    return jax.random.uniform(
        key, (out_features, in_features), dtype=jnp.float32,
        minval=-bound, maxval=bound,
    )


if __name__ == "__main__":
    key = jax.random.PRNGKey(0)
    k_x, k_w, k_l = jax.random.split(key, 3)

    B, D, C = 40, 64, 300          # batch, in_features, out_features (small demo)
    s, m = 30.0, 0.35

    x = jax.random.normal(k_x, (B, D), dtype=jnp.float32)
    W = xavier_uniform(k_w, C, D)
    label = jax.random.randint(k_l, (B,), 0, C, dtype=jnp.int32)

    # Training path, batch-tiled -> exercises the swapped (class-outer) grid,
    # masked edge blocks on both axes, and the per-tile label offset.
    out_train = cosface_forward(x, W, label, s=s, m=m, block_b=16, block_c=128)
    # Training path, default tiles -> full-batch x tile, W streamed once.
    out_train_full = cosface_forward(x, W, label, s=s, m=m)
    # Inference path (label=None -> plain cosine logits), class-tiled.
    out_infer = cosface_forward(x, W, None, s=s, m=m, block_c=128)
    # Optional bf16 MXU fast path (accuracy checked at a looser tolerance).
    out_bf16 = cosface_forward(x, W, label, s=s, m=m,
                               block_b=16, block_c=128, mxu_dtype=jnp.bfloat16)

    jax.block_until_ready(out_train)
    jax.block_until_ready(out_train_full)
    jax.block_until_ready(out_infer)
    jax.block_until_ready(out_bf16)

    # Reference in plain JAX (HIGHEST precision so the f32 reference matmul is exact).
    xn = x / jnp.maximum(jnp.linalg.norm(x, axis=1, keepdims=True), 1e-12)
    wn = W / jnp.maximum(jnp.linalg.norm(W, axis=1, keepdims=True), 1e-12)
    logits_ref = jnp.dot(xn, wn.T, precision=jax.lax.Precision.HIGHEST)
    oh = jax.nn.one_hot(label, C, dtype=jnp.float32)
    out_ref = (logits_ref - m * oh) * s

    assert out_infer.shape == (B, C) and out_train.shape == (B, C)
    assert jnp.allclose(out_infer, logits_ref, atol=1e-3), "inference path mismatch"
    assert jnp.allclose(out_train, out_ref, atol=1e-3), "training (tiled) mismatch"
    assert jnp.allclose(out_train_full, out_ref, atol=1e-3), "training (full-batch) mismatch"
    assert jnp.allclose(out_bf16, out_ref, atol=0.5), "bf16 fast path mismatch"

    print("KERNEL_OK")
</pallas_src>

<mosaic_0001>
module attributes {stable_mosaic.version = 11 : i64} {
  func.func @_cosface_margin_kernel(%arg0: i32, %arg1: i32, %arg2: memref<16x64xf32, #tpu.memory_space<vmem>>, %arg3: memref<128x64xf32, #tpu.memory_space<vmem>>, %arg4: memref<16x1xf32, #tpu.memory_space<vmem>>, %arg5: memref<1x128xf32, #tpu.memory_space<vmem>>, %arg6: memref<16x1xi32, #tpu.memory_space<vmem>>, %arg7: memref<16x128xf32, #tpu.memory_space<vmem>>) attributes {dimension_semantics = [#tpu.dimension_semantics<parallel>, #tpu.dimension_semantics<parallel>], iteration_bounds = array<i64: 3, 3>, scalar_prefetch = 0 : i64, scratch_operands = 0 : i64, tpu.core_type = #tpu.core_type<tc>, window_params = [{transform_indices = @transform_0, window_bounds = array<i64: 16, 64>}, {transform_indices = @transform_1, window_bounds = array<i64: 128, 64>}, {transform_indices = @transform_2, window_bounds = array<i64: 16, 1>}, {transform_indices = @transform_3, window_bounds = array<i64: 1, 128>}, {transform_indices = @transform_4, window_bounds = array<i64: 16, 1>}, {transform_indices = @transform_5, window_bounds = array<i64: 16, 128>}]} {
    %c0 = arith.constant 0 : index
    %c0_0 = arith.constant 0 : index
    %0 = vector.load %arg2[%c0, %c0_0] : memref<16x64xf32, #tpu.memory_space<vmem>>, vector<16x64xf32>
    %c0_1 = arith.constant 0 : index
    %c0_2 = arith.constant 0 : index
    %1 = vector.load %arg3[%c0_1, %c0_2] : memref<128x64xf32, #tpu.memory_space<vmem>>, vector<128x64xf32>
    %cst = arith.constant dense<0.000000e+00> : vector<16x128xf32>
    %2 = tpu.matmul %0, %1, %cst {dimension_numbers = #tpu.dot_dimension_numbers<[1], [1], [0], [0], [0, 0, 1, 0], [], []>} : vector<16x64xf32>, vector<128x64xf32>, vector<16x128xf32> -> vector<16x128xf32>
    %c0_3 = arith.constant 0 : index
    %c0_4 = arith.constant 0 : index
    %3 = vector.load %arg4[%c0_3, %c0_4] : memref<16x1xf32, #tpu.memory_space<vmem>>, vector<16x1xf32>
    %4 = vector.broadcast %3 : vector<16x1xf32> to vector<16x128xf32>
    %5 = arith.mulf %2, %4 : vector<16x128xf32>
    %c0_5 = arith.constant 0 : index
    %c0_6 = arith.constant 0 : index
    %6 = vector.load %arg5[%c0_5, %c0_6] : memref<1x128xf32, #tpu.memory_space<vmem>>, vector<1x128xf32>
    %7 = vector.broadcast %6 : vector<1x128xf32> to vector<16x128xf32>
    %8 = arith.mulf %5, %7 : vector<16x128xf32>
    %9 = tpu.iota {dimensions = array<i32: 1>} : vector<16x128xi32>
    %c0_7 = arith.constant 0 : index
    %c0_8 = arith.constant 0 : index
    %10 = vector.load %arg6[%c0_7, %c0_8] : memref<16x1xi32, #tpu.memory_space<vmem>>, vector<16x1xi32>
    %c128_i32 = arith.constant 128 : i32
    %11 = arith.muli %arg0, %c128_i32 : i32
    %12 = vector.broadcast %11 : i32 to vector<16x1xi32>
    %13 = arith.subi %10, %12 : vector<16x1xi32>
    %14 = vector.broadcast %13 : vector<16x1xi32> to vector<16x128xi32>
    %15 = arith.cmpi eq, %9, %14 : vector<16x128xi32>
    %cst_9 = arith.constant 1.050000e+01 : f32
    %16 = vector.broadcast %cst_9 : f32 to vector<16x128xf32>
    %17 = arith.subf %8, %16 : vector<16x128xf32>
    %18 = arith.select %15, %17, %8 : vector<16x128xi1>, vector<16x128xf32>
    %c0_10 = arith.constant 0 : index
    %c0_11 = arith.constant 0 : index
    %19 = vector.load %arg7[%c0_10, %c0_11] : memref<16x128xf32, #tpu.memory_space<vmem>>, vector<16x128xf32>
    tpu.vector_store %arg7[%c0_10, %c0_11], %18 {strides = array<i32>} : memref<16x128xf32, #tpu.memory_space<vmem>>, vector<16x128xf32>,
    return
  }
  func.func @transform_0(%arg0: i32, %arg1: i32) -> (i32, i32) {
    %c0_i32 = arith.constant 0 : i32
    %c0_i32_0 = arith.constant 0 : i32
    return %arg1, %c0_i32 : i32, i32
  }
  func.func @transform_1(%arg0: i32, %arg1: i32) -> (i32, i32) {
    %c0_i32 = arith.constant 0 : i32
    %c0_i32_0 = arith.constant 0 : i32
    return %arg0, %c0_i32 : i32, i32
  }
  func.func @transform_2(%arg0: i32, %arg1: i32) -> (i32, i32) {
    %c0_i32 = arith.constant 0 : i32
    %c0_i32_0 = arith.constant 0 : i32
    return %arg1, %c0_i32 : i32, i32
  }
  func.func @transform_3(%arg0: i32, %arg1: i32) -> (i32, i32) {
    %c0_i32 = arith.constant 0 : i32
    %c0_i32_0 = arith.constant 0 : i32
    return %c0_i32, %arg0 : i32, i32
  }
  func.func @transform_4(%arg0: i32, %arg1: i32) -> (i32, i32) {
    %c0_i32 = arith.constant 0 : i32
    %c0_i32_0 = arith.constant 0 : i32
    return %arg1, %c0_i32 : i32, i32
  }
  func.func @transform_5(%arg0: i32, %arg1: i32) -> (i32, i32) {
    %c0_i32 = arith.constant 0 : i32
    return %arg1, %arg0 : i32, i32
  }
}

</mosaic_0001>

<llo_original>
// kernel: tpu_custom_call.1
$region0: #{tpu_custom_call.1}
  #allocation0 [shape = 'u32[]', space=smem, size = 0x4, offset = 0x4, fixed_abs, tag = 'smem constant byte address 0x4 - core index']
  #allocation1 [shape = 'u32[144,128]{1,0:T(1,128)}', space=vmem, size = 0x12000, scoped, tag = 'internal scratch']
  %s0 = inlined_call_operand.vmem [shape: f32[40,64], index: 0, kind: input, shape index: {}]
  %s1 = inlined_call_operand.vmem [shape: f32[300,64], index: 1, kind: input, shape index: {}]
  %s2 = inlined_call_operand.vmem [shape: f32[40,1], index: 2, kind: input, shape index: {}]
  %s3 = inlined_call_operand.vmem [shape: f32[1,300], index: 3, kind: input, shape index: {}]
  %s4 = inlined_call_operand.vmem [shape: s32[40,1], index: 4, kind: input, shape index: {}]
  %s5 = inlined_call_operand.hbm [shape: f32[40,300], index: 5, kind: output, shape index: {}]
  %s6 = sld [smem:[#allocation0]]
  $region53: #{tpu_custom_call.1} parent=0
    _
  %s8 = ssub.s32 1, %s6
  %s9 = scalar_select 0, %s8, %s6
  $region1: #{tpu_custom_call.1} parent=0
    #allocation2 [shape = 'u8[16384]{0}', space=vmem, size = 0x4000, scoped, tag = 'output window, operand 0']
    #allocation3 [shape = 's32[2]{0}', space=sflag, size = 0x8, scoped, tag = 'scoped memory for tpu_custom_call.1']
    %10 = vsyncpa [#allocation3], 0
    %s11 = scalar_lea.sflag [#allocation3], 1
    %12 = vsyncpa %s11, 0
    loop: start=0, step=1, limit=11
    $region2: #{tpu_custom_call.1} parent=1 // loop_pre_header
      _
    $region3: #{tpu_custom_call.1} parent=1 // loop_header
      %s14 = sphi 0, %s18
      %p15 = scmp.ge.s32.totalorder %s14, 11
      %s21 = sphi 0, %s33
      %s22 = sphi 0, %s29
      %s23 = sphi 0, %s21
      %s24 = sphi 0, %s22
      %s25 = sphi 0, %s23
      %s26 = sphi 0, %s24
      %s36 = sphi 0, %s38
      %s39 = sphi 0, %s36
      %s40 = sphi 0, %s39
      %s56 = sphi 0, %s40
      %s62 = sphi 0, %s64
      %s65 = sphi 0, %s62
      %s66 = sphi 0, %s65
      %s82 = sphi 0, %s66
      %s88 = sphi 0, %s90
      %s91 = sphi 0, %s88
      %s92 = sphi 0, %s91
      %s108 = sphi 0, %s92
      %s114 = sphi 0, %s116
      %s117 = sphi 0, %s114
      %s118 = sphi 0, %s117
      %s134 = sphi 0, %s118
      %s140 = sphi 0, %s142
      %s143 = sphi 0, %s140
      %s144 = sphi 0, %s143
      %s160 = sphi 0, %s144
      %s168 = sphi 0, %s170
      %s171 = sphi 0, %s168
      %s172 = sphi 0, %s171
      %s188 = sphi 0, %s172
    $region4: #{tpu_custom_call.1} parent=1 // loop_header_branch
      %17 = sbr.rel (%p15) target = $region8
    $region5: #{tpu_custom_call.1} parent=1 // loop_body
      %s19 = ssub.s32 %s14, 1
      %s20 = ssub.s32 %s14, 2
      %s27 = sadd.s32 1, %s22
      %p28 = scmp.ge.s32.totalorder %s27, 3
      %s29 = scalar_select %p28, 0, %s27
      %s30 = sadd.s32 1, %s21
      %s31 = scalar_select %p28, %s30, %s21
      %p32 = scmp.ge.s32.totalorder %s31, 3
      %s33 = scalar_select %p32, 0, %s31
      %s34 = ssub.s32 %s22, %s29
      %p35 = scmp.eq.s32.totalorder %s34, 0
      %s37 = sadd.s32 %s36, 1
      %s38 = scalar_select %p35, %s36, %s37
      %p41 = pneg %p35
      %p42 = scmp.eq.s32.totalorder %s14, 8
      %p43 = por %p41, %p42
      %p44 = scmp.ne.s32.totalorder %s36, %s39
      %p45 = scmp.eq.s32.totalorder %s14, 0
      %p46 = por %p44, %p45
      %p47 = scmp.ne.s32.totalorder %s36, %s39
      %p48 = scmp.eq.s32.totalorder %s19, 8
      %p49 = por %p47, %p48
      %p50 = scmp.ne.s32.totalorder %s39, %s40
      %p51 = scmp.eq.s32.totalorder %s19, 0
      %p52 = por %p50, %p51
      %p53 = scmp.ne.s32.totalorder %s39, %s40
      %p54 = scmp.eq.s32.totalorder %s20, 8
      %p55 = por %p53, %p54
      %p57 = scmp.ne.s32.totalorder %s40, %s56
      %p58 = scmp.eq.s32.totalorder %s20, 0
      %p59 = por %p57, %p58
      %s60 = ssub.s32 %s21, %s33
      %p61 = scmp.eq.s32.totalorder %s60, 0
      %s63 = sadd.s32 %s62, 1
      %s64 = scalar_select %p61, %s62, %s63
      %p67 = pneg %p61
      %p68 = scmp.eq.s32.totalorder %s14, 8
      %p69 = por %p67, %p68
      %p70 = scmp.ne.s32.totalorder %s62, %s65
      %p71 = scmp.eq.s32.totalorder %s14, 0
      %p72 = por %p70, %p71
      %p73 = scmp.ne.s32.totalorder %s62, %s65
      %p74 = scmp.eq.s32.totalorder %s19, 8
      %p75 = por %p73, %p74
      %p76 = scmp.ne.s32.totalorder %s65, %s66
      %p77 = scmp.eq.s32.totalorder %s19, 0
      %p78 = por %p76, %p77
      %p79 = scmp.ne.s32.totalorder %s65, %s66
      %p80 = scmp.eq.s32.totalorder %s20, 8
      %p81 = por %p79, %p80
      %p83 = scmp.ne.s32.totalorder %s66, %s82
      %p84 = scmp.eq.s32.totalorder %s20, 0
      %p85 = por %p83, %p84
      %s86 = ssub.s32 %s22, %s29
      %p87 = scmp.eq.s32.totalorder %s86, 0
      %s89 = sadd.s32 %s88, 1
      %s90 = scalar_select %p87, %s88, %s89
      %p93 = pneg %p87
      %p94 = scmp.eq.s32.totalorder %s14, 8
      %p95 = por %p93, %p94
      %p96 = scmp.ne.s32.totalorder %s88, %s91
      %p97 = scmp.eq.s32.totalorder %s14, 0
      %p98 = por %p96, %p97
      %p99 = scmp.ne.s32.totalorder %s88, %s91
      %p100 = scmp.eq.s32.totalorder %s19, 8
      %p101 = por %p99, %p100
      %p102 = scmp.ne.s32.totalorder %s91, %s92
      %p103 = scmp.eq.s32.totalorder %s19, 0
      %p104 = por %p102, %p103
      %p105 = scmp.ne.s32.totalorder %s91, %s92
      %p106 = scmp.eq.s32.totalorder %s20, 8
      %p107 = por %p105, %p106
      %p109 = scmp.ne.s32.totalorder %s92, %s108
      %p110 = scmp.eq.s32.totalorder %s20, 0
      %p111 = por %p109, %p110
      %s112 = ssub.s32 %s21, %s33
      %p113 = scmp.eq.s32.totalorder %s112, 0
      %s115 = sadd.s32 %s114, 1
      %s116 = scalar_select %p113, %s114, %s115
      %p119 = pneg %p113
      %p120 = scmp.eq.s32.totalorder %s14, 8
      %p121 = por %p119, %p120
      %p122 = scmp.ne.s32.totalorder %s114, %s117
      %p123 = scmp.eq.s32.totalorder %s14, 0
      %p124 = por %p122, %p123
      %p125 = scmp.ne.s32.totalorder %s114, %s117
      %p126 = scmp.eq.s32.totalorder %s19, 8
      %p127 = por %p125, %p126
      %p128 = scmp.ne.s32.totalorder %s117, %s118
      %p129 = scmp.eq.s32.totalorder %s19, 0
      %p130 = por %p128, %p129
      %p131 = scmp.ne.s32.totalorder %s117, %s118
      %p132 = scmp.eq.s32.totalorder %s20, 8
      %p133 = por %p131, %p132
      %p135 = scmp.ne.s32.totalorder %s118, %s134
      %p136 = scmp.eq.s32.totalorder %s20, 0
      %p137 = por %p135, %p136
      %s138 = ssub.s32 %s22, %s29
      %p139 = scmp.eq.s32.totalorder %s138, 0
      %s141 = sadd.s32 %s140, 1
      %s142 = scalar_select %p139, %s140, %s141
      %p145 = pneg %p139
      %p146 = scmp.eq.s32.totalorder %s14, 8
      %p147 = por %p145, %p146
      %p148 = scmp.ne.s32.totalorder %s140, %s143
      %p149 = scmp.eq.s32.totalorder %s14, 0
      %p150 = por %p148, %p149
      %p151 = scmp.ne.s32.totalorder %s140, %s143
      %p152 = scmp.eq.s32.totalorder %s19, 8
      %p153 = por %p151, %p152
      %p154 = scmp.ne.s32.totalorder %s143, %s144
      %p155 = scmp.eq.s32.totalorder %s19, 0
      %p156 = por %p154, %p155
      %p157 = scmp.ne.s32.totalorder %s143, %s144
      %p158 = scmp.eq.s32.totalorder %s20, 8
      %p159 = por %p157, %p158
      %p161 = scmp.ne.s32.totalorder %s144, %s160
      %p162 = scmp.eq.s32.totalorder %s20, 0
      %p163 = por %p161, %p162
      %s164 = ssub.s32 %s22, %s29
      %s165 = ssub.s32 %s21, %s33
      %s166 = sor.u32 %s164, %s165
      %p167 = scmp.eq.s32.totalorder %s166, 0
      %s169 = sadd.s32 %s168, 1
      %s170 = scalar_select %p167, %s168, %s169
      %p173 = pneg %p167
      %p174 = scmp.eq.s32.totalorder %s14, 8
      %p175 = por %p173, %p174
      %p176 = scmp.ne.s32.totalorder %s168, %s171
      %p177 = scmp.eq.s32.totalorder %s14, 0
      %p178 = por %p176, %p177
      %p179 = scmp.ne.s32.totalorder %s168, %s171
      %p180 = scmp.eq.s32.totalorder %s19, 8
      %p181 = por %p179, %p180
      %p182 = scmp.ne.s32.totalorder %s171, %s172
      %p183 = scmp.eq.s32.totalorder %s19, 0
      %p184 = por %p182, %p183
      %p185 = scmp.ne.s32.totalorder %s171, %s172
      %p186 = scmp.eq.s32.totalorder %s20, 8
      %p187 = por %p185, %p186
      %p189 = scmp.ne.s32.totalorder %s172, %s188
      %p190 = scmp.eq.s32.totalorder %s20, 0
      %p191 = por %p189, %p190
      %p192 = scmp.le.s32.totalorder 1, %s14
      %p193 = scmp.lt.s32.totalorder %s14, 10
      %p194 = pnand %p192, %p193
      %p195 = pneg %p194
      // Predicated region
      $region9: #{tpu_custom_call.1} parent=5 // pred_check
        _
      $region10: #{tpu_custom_call.1} parent=5 // pred_check_branch
        %197 = sbr.rel (%p194) target = $region12
      $region11: #{tpu_custom_call.1} parent=5 // pred_region
        %s198 = ssub.s32 %s14, 1
      $region12: #{tpu_custom_call.1} parent=5 // pred_fallthru
        _
      %p199 = scmp.lt.s32.totalorder %s14, 9
      // Predicated region
      $region13: #{tpu_custom_call.1} parent=5 // pred_check
        %p200 = pneg %p199
      $region14: #{tpu_custom_call.1} parent=5 // pred_check_branch
        %202 = sbr.rel (%p200) target = $region16
      $region15: #{tpu_custom_call.1} parent=5 // pred_region
        // Predicated region
        $region17: #{tpu_custom_call.1} parent=15 // pred_check
          %p203 = pneg %p46
        $region18: #{tpu_custom_call.1} parent=15 // pred_check_branch
          %205 = sbr.rel (%p203) target = $region20
        $region19: #{tpu_custom_call.1} parent=15 // pred_region
          %s206 = smul.u32 2, %s22
          %s207 = ssub.s32 5, %s206
          %p208 = scmp.lt.s32.totalorder %s207, 2
          %s209 = scalar_select %p208, %s207, 2
          %s210 = smul.u32 128, %s209
          %p211 = scmp.lt.s32.totalorder %s206, 4
          %s212 = scalar_select %p211, %s206, 4
          %s213 = smul.addr %s212, 8
          %s214 = scalar_lea.vmem %s0, %s213
          %s215 = smul.u32 2, %s22
          %s216 = ssub.s32 5, %s215
          %p217 = scmp.lt.s32.totalorder %s216, 2
          %s218 = scalar_select %p217, %s216, 2
          %s219 = smul.u32 128, %s218
        $region20: #{tpu_custom_call.1} parent=15 // pred_fallthru
          _
        // Predicated region
        $region21: #{tpu_custom_call.1} parent=15 // pred_check
          %p220 = pneg %p72
        $region22: #{tpu_custom_call.1} parent=15 // pred_check_branch
          %222 = sbr.rel (%p220) target = $region24
        $region23: #{tpu_custom_call.1} parent=15 // pred_region
          %s223 = smul.u32 16, %s21
          %s224 = ssub.s32 38, %s223
          %p225 = scmp.lt.s32.totalorder %s224, 16
          %s226 = scalar_select %p225, %s224, 16
          %s227 = smul.u32 128, %s226
          %p228 = scmp.lt.s32.totalorder %s223, 37
          %s229 = scalar_select %p228, %s223, 37
          %s230 = smul.addr %s229, 8
          %s231 = scalar_lea.vmem %s1, %s230
          %s232 = smul.u32 16, %s21
          %s233 = ssub.s32 38, %s232
          %p234 = scmp.lt.s32.totalorder %s233, 16
          %s235 = scalar_select %p234, %s233, 16
          %s236 = smul.u32 128, %s235
        $region24: #{tpu_custom_call.1} parent=15 // pred_fallthru
          _
        // Predicated region
        $region25: #{tpu_custom_call.1} parent=15 // pred_check
          %p237 = pneg %p98
        $region26: #{tpu_custom_call.1} parent=15 // pred_check_branch
          %239 = sbr.rel (%p237) target = $region28
        $region27: #{tpu_custom_call.1} parent=15 // pred_region
          %s240 = smul.u32 2, %s22
          %s241 = ssub.s32 5, %s240
          %p242 = scmp.lt.s32.totalorder %s241, 2
          %s243 = scalar_select %p242, %s241, 2
          %s244 = smul.u32 128, %s243
          %p245 = scmp.lt.s32.totalorder %s240, 4
          %s246 = scalar_select %p245, %s240, 4
          %s247 = smul.addr %s246, 8
          %s248 = scalar_lea.vmem %s2, %s247
          %s249 = smul.u32 2, %s22
          %s250 = ssub.s32 5, %s249
          %p251 = scmp.lt.s32.totalorder %s250, 2
          %s252 = scalar_select %p251, %s250, 2
          %s253 = smul.u32 128, %s252
        $region28: #{tpu_custom_call.1} parent=15 // pred_fallthru
          _
        // Predicated region
        $region29: #{tpu_custom_call.1} parent=15 // pred_check
          %p254 = pneg %p124
        $region30: #{tpu_custom_call.1} parent=15 // pred_check_branch
          %256 = sbr.rel (%p254) target = $region32
        $region31: #{tpu_custom_call.1} parent=15 // pred_region
          %p257 = scmp.lt.s32.totalorder %s21, 2
          %s258 = scalar_select %p257, %s21, 2
          %s259 = scalar_lea.vmem %s3, %s258
        $region32: #{tpu_custom_call.1} parent=15 // pred_fallthru
          _
        // Predicated region
        $region33: #{tpu_custom_call.1} parent=15 // pred_check
          %p260 = pneg %p150
        $region34: #{tpu_custom_call.1} parent=15 // pred_check_branch
          %262 = sbr.rel (%p260) target = $region36
        $region35: #{tpu_custom_call.1} parent=15 // pred_region
          %s263 = smul.u32 2, %s22
          %s264 = ssub.s32 5, %s263
          %p265 = scmp.lt.s32.totalorder %s264, 2
          %s266 = scalar_select %p265, %s264, 2
          %s267 = smul.u32 128, %s266
          %p268 = scmp.lt.s32.totalorder %s263, 4
          %s269 = scalar_select %p268, %s263, 4
          %s270 = smul.addr %s269, 8
          %s271 = scalar_lea.vmem %s4, %s270
          %s272 = smul.u32 2, %s22
          %s273 = ssub.s32 5, %s272
          %p274 = scmp.lt.s32.totalorder %s273, 2
          %s275 = scalar_select %p274, %s273, 2
          %s276 = smul.u32 128, %s275
        $region36: #{tpu_custom_call.1} parent=15 // pred_fallthru
          _
      $region16: #{tpu_custom_call.1} parent=5 // pred_fallthru
        _
      %p277 = scmp.le.s32.totalorder 1, %s14
      %p278 = scmp.lt.s32.totalorder %s14, 10
      %p279 = pnand %p277, %p278
      %p280 = pneg %p279
      // Predicated region
      $region37: #{tpu_custom_call.1} parent=5 // pred_check
        _
      $region38: #{tpu_custom_call.1} parent=5 // pred_check_branch
        %282 = sbr.rel (%p279) target = $region40
      $region39: #{tpu_custom_call.1} parent=5 // pred_region
        %s283 = ssub.s32 %s14, 1
        %s284 = smul.u32 2, %s24
        %s285 = ssub.s32 5, %s284
        %p286 = scmp.lt.s32.totalorder %s285, 2
        %s287 = scalar_select %p286, %s285, 2
        %s288 = smul.u32 128, %s287
        %p289 = scmp.lt.s32.totalorder %s284, 4
        %s290 = scalar_select %p289, %s284, 4
        %s291 = smul.addr %s290, 8
        %s292 = scalar_lea.vmem %s0, %s291
        %p293 = pneg %p52
        %p294 = pneg %p49
        %s295 = smul.u32 16, %s23
        %s296 = ssub.s32 38, %s295
        %p297 = scmp.lt.s32.totalorder %s296, 16
        %s298 = scalar_select %p297, %s296, 16
        %s299 = smul.u32 128, %s298
        %p300 = scmp.lt.s32.totalorder %s295, 37
        %s301 = scalar_select %p300, %s295, 37
        %s302 = smul.addr %s301, 8
        %s303 = scalar_lea.vmem %s1, %s302
        %p304 = pneg %p78
        %p305 = pneg %p75
        %s306 = smul.u32 2, %s24
        %s307 = ssub.s32 5, %s306
        %p308 = scmp.lt.s32.totalorder %s307, 2
        %s309 = scalar_select %p308, %s307, 2
        %s310 = smul.u32 128, %s309
        %p311 = scmp.lt.s32.totalorder %s306, 4
        %s312 = scalar_select %p311, %s306, 4
        %s313 = smul.addr %s312, 8
        %s314 = scalar_lea.vmem %s2, %s313
        %p315 = pneg %p104
        %p316 = pneg %p101
        %p317 = scmp.lt.s32.totalorder %s23, 2
        %s318 = scalar_select %p317, %s23, 2
        %s319 = scalar_lea.vmem %s3, %s318
        %p320 = pneg %p130
        %p321 = pneg %p127
        %s322 = smul.u32 2, %s24
        %s323 = ssub.s32 5, %s322
        %p324 = scmp.lt.s32.totalorder %s323, 2
        %s325 = scalar_select %p324, %s323, 2
        %s326 = smul.u32 128, %s325
        %p327 = scmp.lt.s32.totalorder %s322, 4
        %s328 = scalar_select %p327, %s322, 4
        %s329 = smul.addr %s328, 8
        %s330 = scalar_lea.vmem %s4, %s329
        %p331 = pneg %p156
        %p332 = pneg %p153
        %p333 = pneg %p184
        %p334 = pneg %p181
        %s335 = sand.u32 %s171, 1
        %s336 = scalar_lea.sflag [#allocation3], %s335
        %s337 = sand.u32 %s171, 1
        %s338 = smul.addr %s337, 16
        %s339 = scalar_lea.vmem [#allocation2], %s338
        %s340 = smul.u32 2, %s24
        %s341 = ssub.s32 5, %s340
        %p342 = scmp.lt.s32.totalorder %s341, 2
        %s343 = scalar_select %p342, %s341, 2
        %s344 = smul.u32 128, %s343
        %p345 = scmp.lt.s32.totalorder %s340, 4
        %s346 = scalar_select %p345, %s340, 4
        %s347 = smul.addr %s346, 8
        %s348 = scalar_lea.vmem %s0, %s347
        %s349 = smul.u32 2, %s24
        %s350 = ssub.s32 5, %s349
        %p351 = scmp.lt.s32.totalorder %s350, 2
        %s352 = scalar_select %p351, %s350, 2
        %s353 = smul.u32 128, %s352
        %s354 = smul.u32 16, %s23
        %s355 = ssub.s32 38, %s354
        %p356 = scmp.lt.s32.totalorder %s355, 16
        %s357 = scalar_select %p356, %s355, 16
        %s358 = smul.u32 128, %s357
        %p359 = scmp.lt.s32.totalorder %s354, 37
        %s360 = scalar_select %p359, %s354, 37
        %s361 = smul.addr %s360, 8
        %s362 = scalar_lea.vmem %s1, %s361
        %s363 = smul.u32 16, %s23
        %s364 = ssub.s32 38, %s363
        %p365 = scmp.lt.s32.totalorder %s364, 16
        %s366 = scalar_select %p365, %s364, 16
        %s367 = smul.u32 128, %s366
        %s368 = smul.u32 2, %s24
        %s369 = ssub.s32 5, %s368
        %p370 = scmp.lt.s32.totalorder %s369, 2
        %s371 = scalar_select %p370, %s369, 2
        %s372 = smul.u32 128, %s371
        %p373 = scmp.lt.s32.totalorder %s368, 4
        %s374 = scalar_select %p373, %s368, 4
        %s375 = smul.addr %s374, 8
        %s376 = scalar_lea.vmem %s2, %s375
        %s377 = smul.u32 2, %s24
        %s378 = ssub.s32 5, %s377
        %p379 = scmp.lt.s32.totalorder %s378, 2
        %s380 = scalar_select %p379, %s378, 2
        %s381 = smul.u32 128, %s380
        %p382 = scmp.lt.s32.totalorder %s23, 2
        %s383 = scalar_select %p382, %s23, 2
        %s384 = scalar_lea.vmem %s3, %s383
        %s385 = smul.u32 2, %s24
        %s386 = ssub.s32 5, %s385
        %p387 = scmp.lt.s32.totalorder %s386, 2
        %s388 = scalar_select %p387, %s386, 2
        %s389 = smul.u32 128, %s388
        %p390 = scmp.lt.s32.totalorder %s385, 4
        %s391 = scalar_select %p390, %s385, 4
        %s392 = smul.addr %s391, 8
        %s393 = scalar_lea.vmem %s4, %s392
        %s394 = smul.u32 2, %s24
        %s395 = ssub.s32 5, %s394
        %p396 = scmp.lt.s32.totalorder %s395, 2
        %s397 = scalar_select %p396, %s395, 2
        %s398 = smul.u32 128, %s397
        %s399 = smul.u32 2, %s24
        %s400 = ssub.s32 5, %s399
        %p401 = scmp.lt.s32.totalorder %s400, 2
        %s402 = scalar_select %p401, %s400, 2
        %s403 = smul.u32 128, %s402
        %v404 = vld [vmem:[%s348] sm:$0xff]
        %v405 = vld [vmem:[%s348 + $0x8] sm:$0xff]
        %v406 = vld [vmem:[%s362] sm:$0xff]
        %v407 = vld [vmem:[%s362 + $0x8] sm:$0xff]
        %v408 = vld [vmem:[%s362 + $0x10] sm:$0xff]
        %v409 = vld [vmem:[%s362 + $0x18] sm:$0xff]
        %v410 = vld [vmem:[%s362 + $0x20] sm:$0xff]
        %v411 = vld [vmem:[%s362 + $0x28] sm:$0xff]
        %v412 = vld [vmem:[%s362 + $0x30] sm:$0xff]
        %v413 = vld [vmem:[%s362 + $0x38] sm:$0xff]
        %v414 = vld [vmem:[%s362 + $0x40] sm:$0xff]
        %v415 = vld [vmem:[%s362 + $0x48] sm:$0xff]
        %v416 = vld [vmem:[%s362 + $0x50] sm:$0xff]
        %v417 = vld [vmem:[%s362 + $0x58] sm:$0xff]
        %v418 = vld [vmem:[%s362 + $0x60] sm:$0xff]
        %v419 = vld [vmem:[%s362 + $0x68] sm:$0xff]
        %v420 = vld [vmem:[%s362 + $0x70] sm:$0xff]
        %v421 = vld [vmem:[%s362 + $0x78] sm:$0xff]
        %vm422 = vcmask 523264
        %v424 = vsel %vm422, %v404, 0
        %v427 = vsel %vm422, %v405, 0
        %v430 = vsel %vm422, %v406, 0
        %v433 = vsel %vm422, %v407, 0
        %v436 = vsel %vm422, %v408, 0
        %v439 = vsel %vm422, %v409, 0
        %v442 = vsel %vm422, %v410, 0
        %v445 = vsel %vm422, %v411, 0
        %v448 = vsel %vm422, %v412, 0
        %v451 = vsel %vm422, %v413, 0
        %v454 = vsel %vm422, %v414, 0
        %v457 = vsel %vm422, %v415, 0
        %v460 = vsel %vm422, %v416, 0
        %v463 = vsel %vm422, %v417, 0
        %v466 = vsel %vm422, %v418, 0
        %v469 = vsel %vm422, %v419, 0
        %v472 = vsel %vm422, %v420, 0
        %v475 = vsel %vm422, %v421, 0
        %477 = vmatprep.subr.mxu0 0.0
        %478 = vmatpush1.xpose.msra.mxu0 %v430
        %479 = vmatprep.subr.mxu0 0.0
        %480 = vmatpush1.xpose.msra.mxu0 %v433
        %481 = vmatprep.subr.mxu0 0.0
        %482 = vmatpush1.xpose.msra.mxu0 %v436
        %483 = vmatprep.subr.mxu0 0.0
        %484 = vmatpush1.xpose.msra.mxu0 %v439
        %485 = vmatprep.subr.mxu0 0.0
        %486 = vmatpush1.xpose.msra.mxu0 %v442
        %487 = vmatprep.subr.mxu0 0.0
        %488 = vmatpush1.xpose.msra.mxu0 %v445
        %489 = vmatprep.subr.mxu0 0.0
        %490 = vmatpush1.xpose.msra.mxu0 %v448
        %491 = vmatprep.subr.mxu0 0.0
        %492 = vmatpush1.xpose.msra.mxu0 %v451
        %493 = vmatprep.subr.mxu0 0.0
        %494 = vmatpush1.xpose.msra.mxu0 %v454
        %495 = vmatprep.subr.mxu0 0.0
        %496 = vmatpush1.xpose.msra.mxu0 %v457
        %497 = vmatprep.subr.mxu0 0.0
        %498 = vmatpush1.xpose.msra.mxu0 %v460
        %499 = vmatprep.subr.mxu0 0.0
        %500 = vmatpush1.xpose.msra.mxu0 %v463
        %501 = vmatprep.subr.mxu0 0.0
        %502 = vmatpush1.xpose.msra.mxu0 %v466
        %503 = vmatprep.subr.mxu0 0.0
        %504 = vmatpush1.xpose.msra.mxu0 %v469
        %505 = vmatprep.subr.mxu0 0.0
        %506 = vmatpush1.xpose.msra.mxu0 %v472
        %507 = vmatprep.subr.mxu0 0.0
        %508 = vmatpush1.xpose.msra.mxu0 %v475
        %509 = vmatprep.subr.mxu0 0.0
        %510 = vmatpush1.xpose.msra.mxu0 0.0
        %511 = vmatprep.subr.mxu0 0.0
        %512 = vmatpush1.xpose.msra.mxu0 0.0
        %513 = vmatprep.subr.mxu0 0.0
        %514 = vmatpush1.xpose.msra.mxu0 0.0
        %515 = vmatprep.subr.mxu0 0.0
        %516 = vmatpush1.xpose.msra.mxu0 0.0
        %517 = vmatprep.subr.mxu0 0.0
        %518 = vmatpush1.xpose.msra.mxu0 0.0
        %519 = vmatprep.subr.mxu0 0.0
        %520 = vmatpush1.xpose.msra.mxu0 0.0
        %521 = vmatprep.subr.mxu0 0.0
        %522 = vmatpush1.xpose.msra.mxu0 0.0
        %523 = vmatprep.subr.mxu0 0.0
        %524 = vmatpush1.xpose.msra.mxu0 0.0
        %525 = vmatprep.subr.mxu0 0.0
        %526 = vmatpush1.xpose.msra.mxu0 0.0
        %527 = vmatprep.subr.mxu0 0.0
        %528 = vmatpush1.xpose.msra.mxu0 0.0
        %529 = vmatprep.subr.mxu0 0.0
        %530 = vmatpush1.xpose.msra.mxu0 0.0
        %531 = vmatprep.subr.mxu0 0.0
        %532 = vmatpush1.xpose.msra.mxu0 0.0
        %533 = vmatprep.subr.mxu0 0.0
        %534 = vmatpush1.xpose.msra.mxu0 0.0
        %535 = vmatprep.subr.mxu0 0.0
        %536 = vmatpush1.xpose.msra.mxu0 0.0
        %537 = vmatprep.subr.mxu0 0.0
        %538 = vmatpush1.xpose.msra.mxu0 0.0
        %539 = vmatprep.subr.mxu0 0.0
        %540 = vmatpush1.xpose.msra.mxu0 0.0
        %541 = vmatprep.mubr.f32.mxu0 0.0
        %542 = vmatmul.mubr.f32.gmra.mrb[0].mxu0 %v424
        %v543 = vpop.f32.mrb[0].mxu0
        %v544 = vadd.f32 0.0, %v543
        %v545 = vpop.f32.mrb[0].mxu0
        %546 = vmatprep.mubr.f32.mxu0 0.0
        %547 = vmatmul.mubr.f32.gmra.mrb[0].mxu0 %v427
        %v548 = vpop.f32.mrb[0].mxu0
        %v549 = vadd.f32 0.0, %v548
        %v550 = vpop.f32.mrb[0].mxu0
        %551 = vdwg.mxu0
        %v552 = vld [vmem:[%s376] sm:$0xff]
        %v553 = vld [vmem:[%s376 + $0x8] sm:$0xff]
        %555 = vset.pattern.permute.xlu0 0
        %556 = vperm.xlu0 %555, %v552
        %v557 = vpop.permute.xlu0 %556
        %560 = vset.pattern.permute.xlu0 0
        %561 = vperm.xlu0 %560, %v553
        %v562 = vpop.permute.xlu0 %561
        %v564 = vmul.f32 %v544, %v557
        %v565 = vmul.f32 %v549, %v562
        %v566 = vld [vmem:[%s384] sm:$0x1]
        %v568 = vlaneseq
        %v569 = vshrl.u32 %v568, 7
        %v570 = vsub.s32 0, %v569
        %v571 = vrot.slane %v566, %v570
        %v573 = vmul.f32 %v564, %v571
        %v574 = vmul.f32 %v565, %v571
        %v575 = vlaneseq
        %v576 = vand.u32 %v575, 127
        %v577 = vld [vmem:[%s393] sm:$0xff]
        %v578 = vld [vmem:[%s393 + $0x8] sm:$0xff]
        %s579 = smul.u32 %s23, 128
        %v580 = vstv %s579
        %v581 = vsub.s32 %v577, %v580
        %v582 = vsub.s32 %v578, %v580
        %583 = vset.pattern.permute.xlu0 0
        %584 = vperm.xlu0 %583, %v581
        %v585 = vpop.permute.xlu0 %584
        %586 = vset.pattern.permute.xlu0 0
        %587 = vperm.xlu0 %586, %v582
        %v588 = vpop.permute.xlu0 %587
        %vm589 = vcmp.eq.s32.totalorder %v576, %v585
        %vm590 = vcmp.eq.s32.totalorder %v576, %v588
        %v591 = vsub.f32 %v573, 10.5
        %v592 = vsub.f32 %v574, 10.5
        %v593 = vsel %vm589, %v591, %v573
        %v594 = vsel %vm590, %v592, %v574
        %595 = vst [vmem:[%s339] sm:$0xff] %v593
        %596 = vst [vmem:[%s339 + $0x8] sm:$0xff] %v594
        %s597 = sand.u32 %s171, 1
        %s598 = scalar_lea.sflag [#allocation3], %s597
        %s599 = sand.u32 %s171, 1
        %s600 = smul.addr %s599, 16
        %s601 = scalar_lea.vmem [#allocation2], %s600
        // Predicated region
        $region41: #{tpu_custom_call.1} parent=39 // pred_check
          %p602 = pneg %p181
        $region42: #{tpu_custom_call.1} parent=39 // pred_check_branch
          %604 = sbr.rel (%p602) target = $region44
        $region43: #{tpu_custom_call.1} parent=39 // pred_region
          %s605 = smul.u32 2, %s24
          %s606 = ssub.s32 5, %s605
          %p607 = scmp.lt.s32.totalorder %s606, 2
          %s608 = scalar_select %p607, %s606, 2
          %s609 = smul.u32 128, %s608
          %s611 = ssub.s32 256, %s609
          %612 = vsyncadd %s598, %s611
          %p613 = scmp.ne.s32.totalorder 0, %s609
          %s614 = smul.addr %s605, 3
          %s615 = sadd.s32 %s23, %s614
          %s616 = smul.addr %s615, 128
          %s617 = scalar_lea.hbm %s5, %s616
          %s618 = smul.u32 8, %s608
          %s619 = sshll.u32 %s601, 4
          %s620 = int_to_ptr.vmem [resolvable:$true] %s619
          %s621 = sshll.u32 %s618, 4
          %625 = dma.vmem_to_hbm [thread:$0]  (%p613), %s620, %s621, %s617, %s598, 128, 384, 8
        $region44: #{tpu_custom_call.1} parent=39 // pred_fallthru
          _
      $region40: #{tpu_custom_call.1} parent=5 // pred_fallthru
        _
      %p626 = scmp.le.s32.totalorder 2, %s14
      // Predicated region
      $region45: #{tpu_custom_call.1} parent=5 // pred_check
        %p627 = pneg %p626
      $region46: #{tpu_custom_call.1} parent=5 // pred_check_branch
        %629 = sbr.rel (%p627) target = $region48
      $region47: #{tpu_custom_call.1} parent=5 // pred_region
        %s630 = ssub.s32 %s14, 2
        // Predicated region
        $region49: #{tpu_custom_call.1} parent=47 // pred_check
          %p631 = pneg %p187
        $region50: #{tpu_custom_call.1} parent=47 // pred_check_branch
          %633 = sbr.rel (%p631) target = $region52
        $region51: #{tpu_custom_call.1} parent=47 // pred_region
          %s634 = sand.u32 %s172, 1
          %s635 = scalar_lea.sflag [#allocation3], %s634
          %s636 = sand.u32 %s172, 1
          %s637 = smul.addr %s636, 16
          %s638 = scalar_lea.vmem [#allocation2], %s637
          %639 = dma.done %s635, 256
        $region52: #{tpu_custom_call.1} parent=47 // pred_fallthru
          _
      $region48: #{tpu_custom_call.1} parent=5 // pred_fallthru
        _
    $region6: #{tpu_custom_call.1} parent=1 // loop_footer
      %s18 = sadd.s32 1, %s14
    $region7: #{tpu_custom_call.1} parent=1 // loop_footer_branch
      %13 = sbr.rel target = $region3
    $region8: #{tpu_custom_call.1} parent=1 // loop_exit
      _
    %640 = vsyncpa [#allocation3], 1
    %s641 = scalar_lea.sflag [#allocation3], 1
    %642 = vsyncpa %s641, 1

</llo_original>
